<compile_context>
chip_gen: v5e
topology: v5e:2x2
jax: 0.10.0
libtpu: 0.0.40
codegen_flags: <defaults>
</compile_context>

<pallas_src>
import functools

import jax
import jax.numpy as jnp
from jax.experimental import pallas as pl
from jax.experimental.pallas import tpu as pltpu

LANE = 128


def _round_up(a, b):
    return (a + b - 1) // b * b


def threenet_kernel(x_ref, p_ref, b_ref, o_ref, acc_ref, *, hw, thw, num_h, n_rows):
    # Grid: (batch blocks [parallel], spatial tiles [arbitrary / reduction]).
    #   x_ref  : (R, THW)   rows = flattened (sample, channel), lanes = spatial
    #   p_ref  : (SB, R)    fused combine matrix (per-channel weight * 1/HW)
    #   b_ref  : (1, 1)     fused bias (SMEM scalar)
    #   o_ref  : (SB, 1)
    #   acc_ref: (R, 128)   lane-partial spatial sums (f32)
    i = pl.program_id(0)
    h = pl.program_id(1)
    R = acc_ref.shape[0]

    def init():
        acc_ref[...] = jnp.zeros_like(acc_ref)

    def accumulate(valid):
        # Accumulate the first `valid` (static) lanes of this spatial tile.
        nfull = valid // LANE
        if nfull > 0:
            if R <= 128:
                # Small row block: keep the accumulator in vregs across the loop.
                acc = acc_ref[...]
                for j in range(nfull):
                    acc = acc + x_ref[:, j * LANE:(j + 1) * LANE]
                acc_ref[...] = acc
            else:
                for j in range(nfull):
                    acc_ref[...] += x_ref[:, j * LANE:(j + 1) * LANE]
        tail = valid - nfull * LANE
        if tail:
            # Remainder (<128 valid lanes): fold its row sums into lane 0.
            tsum = jnp.sum(x_ref[:, nfull * LANE:valid], axis=-1, keepdims=True)
            acc_ref[:, 0:1] += tsum

    def finalize():
        acc = acc_ref[...]
        if n_rows % R != 0:
            # The last batch block over-reaches the (N*Cin)-row array; the DMA is
            # clamped so those rows hold stale VMEM garbage.  Zero them so that
            # NaN/Inf garbage cannot leak into valid samples through 0-entries of
            # P (0 * NaN == NaN).  OOB output rows are clipped by Pallas anyway.
            row = jax.lax.broadcasted_iota(jnp.int32, acc.shape, 0) + i * R
            acc = jnp.where(row < n_rows, acc, 0.0)
        # Per-sample combine + fused affine chain: (SB,R)@(R,128) -> lane reduce.
        part = jnp.dot(p_ref[...], acc, preferred_element_type=jnp.float32)   # (SB,128)
        out = jnp.sum(part, axis=-1, keepdims=True) + b_ref[0, 0]             # (SB,1)
        o_ref[...] = out.astype(o_ref.dtype)

    if num_h == 1:
        # Full-HW rows per block: no cross-step accumulation, no pl.when overhead.
        init()
        accumulate(hw)
        finalize()
    else:
        @pl.when(h == 0)
        def _():
            init()

        rem = hw - (num_h - 1) * thw
        if rem == thw:
            accumulate(thw)
        else:
            # Remainder handling kept out of the steady state (gated on last tile).
            @pl.when(h < num_h - 1)
            def _():
                accumulate(thw)

            @pl.when(h == num_h - 1)
            def _():
                accumulate(rem)

        @pl.when(h == num_h - 1)
        def _():
            finalize()


def threenet_forward(x_nchw, conv_w, conv_b, lin1_w, lin1_b, lin2_w, lin2_b,
                     *, vmem_budget_bytes=8 * 1024 * 1024):
    """x_nchw: (N, Cin, H, W) float32; weights in PyTorch convention."""
    N, Cin, H, W = x_nchw.shape
    Cc = conv_w.shape[0]                 # conv weight: (Cc, Cin, 1, 1)
    HW = H * W
    NR = N * Cin

    # ---- fold the whole post-pool affine chain into one weight/bias ----------
    # out = pooled @ (wc.T @ w1.T @ w2.T) + (bc @ w1.T @ w2.T + b1 @ w2.T + b2),
    # with pooled = spatial_sum * (1/HW); the 1/HW is folded into the weight.
    wc = conv_w.reshape(Cc, Cin).astype(jnp.float32)
    w_fused = (wc.T @ lin1_w.T @ lin2_w.T).reshape(Cin) * (1.0 / HW)       # (Cin,)
    b_fused = (conv_b @ lin1_w.T @ lin2_w.T + lin1_b @ lin2_w.T
               + lin2_b).reshape(1, 1).astype(jnp.float32)                  # (1, 1)

    # ---- pack x: (N, Cin, H, W) -> (N*Cin, HW); free view, rows on sublanes --
    x2d = x_nchw.reshape(NR, HW).astype(jnp.float32)

    # ---- tile sizing ----------------------------------------------------------
    MAX_THW = 16384                      # multiple of 128; bounds the chunk unroll
    THW = HW if HW <= MAX_THW else MAX_THW

    def blk_bytes(sb, thw):
        return sb * Cin * thw * 4

    # Samples per batch block: a multiple of 8 so both the x row-block (SB*Cin)
    # and the (SB, 1) output block satisfy the (8,128) rule for any N, Cin.
    SB = 8
    while SB * 2 <= _round_up(N, 8) and blk_bytes(SB * 2, THW) <= vmem_budget_bytes:
        SB *= 2
    if N >= 16:
        # Keep >= 2 batch blocks so v7x megacore can shard the parallel axis.
        SB = min(SB, _round_up(-(-N // 2), 8))

    # If even an 8-sample block of full rows blows the budget, tile the spatial
    # axis (128-multiples) instead of shrinking below 8 samples.
    if blk_bytes(SB, THW) > vmem_budget_bytes and THW > LANE:
        THW = max(LANE, (vmem_budget_bytes // (SB * Cin * 4)) // LANE * LANE)

    R = SB * Cin
    num_h = pl.cdiv(HW, THW)
    grid = (pl.cdiv(N, SB), num_h)

    # Fused combine matrix: P[s, r] = w_fused[r % Cin] if r // Cin == s else 0.
    P = jnp.kron(jnp.eye(SB, dtype=jnp.float32), w_fused.reshape(1, Cin))   # (SB, R)

    kernel = functools.partial(threenet_kernel, hw=HW, thw=THW, num_h=num_h,
                               n_rows=NR)

    out = pl.pallas_call(
        kernel,
        out_shape=jax.ShapeDtypeStruct((N, 1), jnp.float32),
        grid=grid,
        in_specs=[
            pl.BlockSpec((R, THW), lambda i, h: (i, h)),                 # x rows
            pl.BlockSpec((SB, R), lambda i, h: (0, 0)),                  # combine matrix
            pl.BlockSpec(memory_space=pltpu.MemorySpace.SMEM),           # fused bias
        ],
        out_specs=pl.BlockSpec((SB, 1), lambda i, h: (i, 0)),
        scratch_shapes=[pltpu.VMEM((R, LANE), jnp.float32)],
        compiler_params=pltpu.CompilerParams(
            dimension_semantics=("parallel", "arbitrary"),
            vmem_limit_bytes=32 * 1024 * 1024),
    )(x2d, P, b_fused)
    return out  # (N, 1)


def reference_forward(x_nchw, conv_w, conv_b, lin1_w, lin1_b, lin2_w, lin2_b):
    N, Cin, H, W = x_nchw.shape
    Cc = conv_w.shape[0]
    xt = jnp.transpose(x_nchw, (0, 2, 3, 1)).reshape(N, H * W, Cin)
    y = jnp.einsum("nsc,oc->nso", xt, conv_w.reshape(Cc, Cin)) + conv_b
    pooled = jnp.mean(y, axis=1)                     # (N, Cc)
    h = pooled @ lin1_w.T + lin1_b                   # (N, L)
    return h @ lin2_w.T + lin2_b                     # (N, 1)


if __name__ == "__main__":
    # Shapes consistent with ThreeNet(input_dim=4, conv_dim=8, linear_dim=32).
    N, Cin, H, W = 2, 4, 16, 16
    Cc, L = 8, 32

    key = jax.random.PRNGKey(0)
    kx, kcw, kcb, k1w, k1b, k2w, k2b = jax.random.split(key, 7)

    x = jax.random.normal(kx, (N, Cin, H, W), dtype=jnp.float32)
    conv_w = 0.1 * jax.random.normal(kcw, (Cc, Cin, 1, 1), dtype=jnp.float32)
    conv_b = 0.1 * jax.random.normal(kcb, (Cc,), dtype=jnp.float32)
    lin1_w = 0.1 * jax.random.normal(k1w, (L, Cc), dtype=jnp.float32)
    lin1_b = 0.1 * jax.random.normal(k1b, (L,), dtype=jnp.float32)
    lin2_w = 0.1 * jax.random.normal(k2w, (1, L), dtype=jnp.float32)
    lin2_b = 0.1 * jax.random.normal(k2b, (1,), dtype=jnp.float32)

    out = threenet_forward(x, conv_w, conv_b, lin1_w, lin1_b, lin2_w, lin2_b)
    out = jax.block_until_ready(out)

    ref = reference_forward(x, conv_w, conv_b, lin1_w, lin1_b, lin2_w, lin2_b)
    assert out.shape == (N, 1)
    assert jnp.allclose(out, ref, atol=1e-5, rtol=1e-5), (out, ref)

    print("KERNEL_OK")
</pallas_src>

<mosaic_0001>
module attributes {stable_mosaic.version = 11 : i64} {
  func.func @threenet_kernel(%arg0: i32, %arg1: i32, %arg2: memref<32x256xf32, #tpu.memory_space<vmem>>, %arg3: memref<8x32xf32, #tpu.memory_space<vmem>>, %arg4: memref<1x1xf32, #tpu.memory_space<smem>>, %arg5: memref<8x1xf32, #tpu.memory_space<vmem>>, %arg6: memref<32x128xf32, #tpu.memory_space<vmem>>) attributes {dimension_semantics = [#tpu.dimension_semantics<parallel>, #tpu.dimension_semantics<arbitrary>], iteration_bounds = array<i64: 1, 1>, scalar_prefetch = 0 : i64, scratch_operands = 1 : i64, tpu.core_type = #tpu.core_type<tc>, window_params = [{transform_indices = @transform_0, window_bounds = array<i64: 32, 256>}, {pipeline_mode = #tpu.pipeline_mode<synchronous>, transform_indices = @transform_1, window_bounds = array<i64: 8, 32>}, {transform_indices = @transform_2, window_bounds = array<i64: 1, 1>}, {transform_indices = @transform_3, window_bounds = array<i64: 8, 1>}]} {
    %cst = arith.constant 0.000000e+00 : f32
    %0 = vector.broadcast %cst : f32 to vector<32x128xf32>
    %c0 = arith.constant 0 : index
    %c0_0 = arith.constant 0 : index
    %1 = vector.load %arg6[%c0, %c0_0] : memref<32x128xf32, #tpu.memory_space<vmem>>, vector<32x128xf32>
    tpu.vector_store %arg6[%c0, %c0_0], %0 {strides = array<i32>} : memref<32x128xf32, #tpu.memory_space<vmem>>, vector<32x128xf32>,
    %c0_1 = arith.constant 0 : index
    %c0_2 = arith.constant 0 : index
    %2 = vector.load %arg6[%c0_1, %c0_2] : memref<32x128xf32, #tpu.memory_space<vmem>>, vector<32x128xf32>
    %c0_3 = arith.constant 0 : index
    %c0_4 = arith.constant 0 : index
    %3 = vector.load %arg2[%c0_3, %c0_4] : memref<32x256xf32, #tpu.memory_space<vmem>>, vector<32x128xf32>
    %4 = arith.addf %2, %3 : vector<32x128xf32>
    %c0_5 = arith.constant 0 : index
    %c128 = arith.constant 128 : index
    %5 = vector.load %arg2[%c0_5, %c128] : memref<32x256xf32, #tpu.memory_space<vmem>>, vector<32x128xf32>
    %6 = arith.addf %4, %5 : vector<32x128xf32>
    %c0_6 = arith.constant 0 : index
    %c0_7 = arith.constant 0 : index
    %7 = vector.load %arg6[%c0_6, %c0_7] : memref<32x128xf32, #tpu.memory_space<vmem>>, vector<32x128xf32>
    tpu.vector_store %arg6[%c0_6, %c0_7], %6 {strides = array<i32>} : memref<32x128xf32, #tpu.memory_space<vmem>>, vector<32x128xf32>,
    %c0_8 = arith.constant 0 : index
    %c0_9 = arith.constant 0 : index
    %8 = vector.load %arg6[%c0_8, %c0_9] : memref<32x128xf32, #tpu.memory_space<vmem>>, vector<32x128xf32>
    %9 = tpu.iota {dimensions = array<i32: 0>} : vector<32x128xi32>
    %c32_i32 = arith.constant 32 : i32
    %10 = arith.muli %arg0, %c32_i32 : i32
    %11 = vector.broadcast %10 : i32 to vector<32x128xi32>
    %12 = arith.addi %9, %11 : vector<32x128xi32>
    %c8_i32 = arith.constant 8 : i32
    %13 = vector.broadcast %c8_i32 : i32 to vector<32x128xi32>
    %14 = arith.cmpi slt, %12, %13 : vector<32x128xi32>
    %cst_10 = arith.constant 0.000000e+00 : f32
    %15 = vector.broadcast %cst_10 : f32 to vector<32x128xf32>
    %16 = arith.select %14, %8, %15 : vector<32x128xi1>, vector<32x128xf32>
    %c0_11 = arith.constant 0 : index
    %c0_12 = arith.constant 0 : index
    %17 = vector.load %arg3[%c0_11, %c0_12] : memref<8x32xf32, #tpu.memory_space<vmem>>, vector<8x32xf32>
    %cst_13 = arith.constant dense<0.000000e+00> : vector<8x128xf32>
    %18 = tpu.matmul %17, %16, %cst_13 {dimension_numbers = #tpu.dot_dimension_numbers<[1], [0], [0], [1], [0, 0, 1, 1], [], []>} : vector<8x32xf32>, vector<32x128xf32>, vector<8x128xf32> -> vector<8x128xf32>
    %cst_14 = arith.constant dense<0.000000e+00> : vector<8xf32>
    %19 = vector.multi_reduction <add>, %18, %cst_14 [1] : vector<8x128xf32> to vector<8xf32>
    %20 = vector.shape_cast %19 : vector<8xf32> to vector<8x1xf32>
    %c0_15 = arith.constant 0 : index
    %c0_16 = arith.constant 0 : index
    %21 = memref.load %arg4[%c0_15, %c0_16] : memref<1x1xf32, #tpu.memory_space<smem>>
    %22 = vector.broadcast %21 : f32 to vector<8x1xf32>
    %23 = arith.addf %20, %22 : vector<8x1xf32>
    %c0_17 = arith.constant 0 : index
    %c0_18 = arith.constant 0 : index
    %24 = vector.load %arg5[%c0_17, %c0_18] : memref<8x1xf32, #tpu.memory_space<vmem>>, vector<8x1xf32>
    tpu.vector_store %arg5[%c0_17, %c0_18], %23 {strides = array<i32>} : memref<8x1xf32, #tpu.memory_space<vmem>>, vector<8x1xf32>,
    return
  }
  func.func @transform_0(%arg0: i32, %arg1: i32) -> (i32, i32) {
    %c0_i32 = arith.constant 0 : i32
    return %arg0, %arg1 : i32, i32
  }
  func.func @transform_1(%arg0: i32, %arg1: i32) -> (i32, i32) {
    %c0_i32 = arith.constant 0 : i32
    %c0_i32_0 = arith.constant 0 : i32
    %c0_i32_1 = arith.constant 0 : i32
    return %c0_i32, %c0_i32_0 : i32, i32
  }
  func.func @transform_2(%arg0: i32, %arg1: i32) -> (i32, i32) {
    %c0_i32 = arith.constant 0 : i32
    %c0_i32_0 = arith.constant 0 : i32
    %c0_i32_1 = arith.constant 0 : i32
    return %c0_i32, %c0_i32_0 : i32, i32
  }
  func.func @transform_3(%arg0: i32, %arg1: i32) -> (i32, i32) {
    %c0_i32 = arith.constant 0 : i32
    %c0_i32_0 = arith.constant 0 : i32
    return %arg0, %c0_i32 : i32, i32
  }
}

</mosaic_0001>

<llo_original>
// kernel: tpu_custom_call.1
$region0: #{tpu_custom_call.1}
  #allocation0 [shape = 'u32[]', space=smem, size = 0x4, offset = 0x4, fixed_abs, tag = 'smem constant byte address 0x4 - core index']
  #allocation1 [shape = 'u32[72,128]{1,0:T(1,128)}', space=vmem, size = 0x9000, scoped, tag = 'internal scratch']
  #allocation2 [shape = 'f32[32,128]{1,0:T(8,128)}', space=vmem, size = 0x4000, scoped, tag = 'scratch operand']
  #allocation3 [shape = 'f32[1,1]{1,0:T(1,128)S(6)}', space=smem, size = 0x200, scoped, tag = 'scoped memory for tpu_custom_call.1']
  %s0 = inlined_call_operand.hbm [shape: f32[8,256], index: 0, kind: input, shape index: {}]
  %s1 = inlined_call_operand.hbm [shape: f32[8,32], index: 1, kind: input, shape index: {}]
  %s2 = inlined_call_operand.<no memory space> [shape: f32[1,1], index: 2, kind: input, shape index: {}]
  %s3 = inlined_call_operand.vmem [shape: f32[2,1], index: 3, kind: output, shape index: {}]
  %s4 = sld [smem:[#allocation0]]
  $region60: #{tpu_custom_call.1} parent=0
    _
  %s6 = ssub.s32 1, %s4
  %s7 = scalar_select 0, %s6, %s4
  %8 = sst [smem:[#allocation3]] %s2
  $region1: #{tpu_custom_call.1} parent=0
    #allocation4 [shape = 'u8[32768]{0}', space=vmem, size = 0x8000, scoped, tag = 'input window, operand 0, single buffered']
    #allocation5 [shape = 's32[1]{0}', space=sflag, size = 0x4, scoped, tag = 'scoped memory for tpu_custom_call.1']
    #allocation6 [shape = 'u8[4096]{0}', space=vmem, size = 0x1000, scoped, tag = 'input window, operand 1, single buffered']
    #allocation7 [shape = 's32[1]{0}', space=sflag, size = 0x4, scoped, tag = 'scoped memory for tpu_custom_call.1']
    #allocation8 [shape = 'u8[4096]{0}', space=vmem, size = 0x1000, scoped, tag = 'output window, operand 0, single buffered']
    %9 = vsyncpa [#allocation5], 0
    %10 = vsyncpa [#allocation7], 0
    // Predicated region
    $region2: #{tpu_custom_call.1} parent=1 // pred_check
      _
    $region3: #{tpu_custom_call.1} parent=1 // pred_check_branch
      %12 = sbr.rel (0) target = $region5
    $region4: #{tpu_custom_call.1} parent=1 // pred_region
      %14 = vsyncadd [#allocation5], 768
      %s15 = sshll.u32 %s0, 4
      %s16 = int_to_ptr.hbm [resolvable:$true] %s15
      %s17 = sshll.u32 [#allocation4], 4
      %s18 = int_to_ptr.vmem [resolvable:$true] %s17
      %23 = dma.hbm_to_vmem [thread:$0]  %s16, 256, %s18, [#allocation5], 256, 256, 16
    $region5: #{tpu_custom_call.1} parent=1 // pred_fallthru
      _
    // Predicated region
    $region6: #{tpu_custom_call.1} parent=1 // pred_check
      _
    $region7: #{tpu_custom_call.1} parent=1 // pred_check_branch
      %25 = sbr.rel (0) target = $region9
    $region8: #{tpu_custom_call.1} parent=1 // pred_region
      %27 = vsyncadd [#allocation7], 0
      %s29 = sshll.u32 %s1, 4
      %s30 = int_to_ptr.hbm [resolvable:$true] %s29
      %s31 = sshll.u32 [#allocation6], 4
      %s32 = int_to_ptr.vmem [resolvable:$true] %s31
      %34 = dma.hbm_to_vmem [thread:$0]  %s30, 128, %s32, [#allocation7]
    $region9: #{tpu_custom_call.1} parent=1 // pred_fallthru
      _
    // Predicated region
    $region10: #{tpu_custom_call.1} parent=1 // pred_check
      _
    $region11: #{tpu_custom_call.1} parent=1 // pred_check_branch
      %36 = sbr.rel (0) target = $region13
    $region12: #{tpu_custom_call.1} parent=1 // pred_region
      _
    $region13: #{tpu_custom_call.1} parent=1 // pred_fallthru
      _
    // Predicated region
    $region14: #{tpu_custom_call.1} parent=1 // pred_check
      _
    $region15: #{tpu_custom_call.1} parent=1 // pred_check_branch
      %38 = sbr.rel (0) target = $region17
    $region16: #{tpu_custom_call.1} parent=1 // pred_region
      %40 = dma.done [#allocation5], 1024
    $region17: #{tpu_custom_call.1} parent=1 // pred_fallthru
      _
    // Predicated region
    $region18: #{tpu_custom_call.1} parent=1 // pred_check
      _
    $region19: #{tpu_custom_call.1} parent=1 // pred_check_branch
      %42 = sbr.rel (0) target = $region21
    $region20: #{tpu_custom_call.1} parent=1 // pred_region
      %44 = dma.done [#allocation7], 128
    $region21: #{tpu_custom_call.1} parent=1 // pred_fallthru
      _
    %45 = vst [vmem:[#allocation2] sm:$0xff] 0.0
    %46 = vst [vmem:[#allocation2 + $0x8] sm:$0xff] 0.0
    %47 = vst [vmem:[#allocation2 + $0x10] sm:$0xff] 0.0
    %48 = vst [vmem:[#allocation2 + $0x18] sm:$0xff] 0.0
    %v49 = vld [vmem:[#allocation2] sm:$0xff]
    %v50 = vld [vmem:[#allocation2 + $0x8] sm:$0xff]
    %v51 = vld [vmem:[#allocation2 + $0x10] sm:$0xff]
    %v52 = vld [vmem:[#allocation2 + $0x18] sm:$0xff]
    %v53 = vld [vmem:[#allocation4] sm:$0xff]
    %v54 = vld [vmem:[#allocation4 + $0x10] sm:$0xff]
    %v55 = vld [vmem:[#allocation4 + $0x20] sm:$0xff]
    %v56 = vld [vmem:[#allocation4 + $0x30] sm:$0xff]
    %v57 = vadd.f32 %v49, %v53
    %v58 = vadd.f32 %v50, %v54
    %v59 = vadd.f32 %v51, %v55
    %v60 = vadd.f32 %v52, %v56
    %v61 = vld [vmem:[#allocation4 + $0x8] sm:$0xff]
    %v62 = vld [vmem:[#allocation4 + $0x18] sm:$0xff]
    %v63 = vld [vmem:[#allocation4 + $0x28] sm:$0xff]
    %v64 = vld [vmem:[#allocation4 + $0x38] sm:$0xff]
    %v65 = vadd.f32 %v57, %v61
    %v66 = vadd.f32 %v58, %v62
    %v67 = vadd.f32 %v59, %v63
    %v68 = vadd.f32 %v60, %v64
    %69 = vst [vmem:[#allocation2] sm:$0xff] %v65
    %70 = vst [vmem:[#allocation2 + $0x8] sm:$0xff] %v66
    %71 = vst [vmem:[#allocation2 + $0x10] sm:$0xff] %v67
    %72 = vst [vmem:[#allocation2 + $0x18] sm:$0xff] %v68
    %v73 = vld [vmem:[#allocation2] sm:$0xff]
    %v74 = vld [vmem:[#allocation2 + $0x8] sm:$0xff]
    %v75 = vld [vmem:[#allocation2 + $0x10] sm:$0xff]
    %v76 = vld [vmem:[#allocation2 + $0x18] sm:$0xff]
    %v77 = vlaneseq
    %v78 = vshrl.u32 %v77, 7
    %v79 = vadd.s32 %v78, 8
    %v80 = vadd.s32 %v78, 16
    %v81 = vadd.s32 %v78, 24
    %s82 = smul.u32 0, 32
    %v83 = vstv %s82
    %v84 = vadd.s32 %v78, %v83
    %v85 = vadd.s32 %v79, %v83
    %v86 = vadd.s32 %v80, %v83
    %v87 = vadd.s32 %v81, %v83
    %vm88 = vcmp.lt.s32.totalorder %v84, 8
    %vm89 = vcmp.lt.s32.totalorder %v85, 8
    %vm90 = vcmp.lt.s32.totalorder %v86, 8
    %vm91 = vcmp.lt.s32.totalorder %v87, 8
    %v92 = vsel %vm88, %v73, 0.0
    %v93 = vsel %vm89, %v74, 0.0
    %v94 = vsel %vm90, %v75, 0.0
    %v95 = vsel %vm91, %v76, 0.0
    %v96 = vld [vmem:[#allocation6] sm:$0xff]
    %vm97 = vcmask 261120
    %v99 = vsel %vm97, %v96, 0
    %101 = vmatpush.msra.mxu0 0.0
    %102 = vmatpush.msra.mxu0 0.0
    %103 = vmatpush.msra.mxu0 0.0
    %104 = vmatpush.msra.mxu0 0.0
    %105 = vmatpush.msra.mxu0 0.0
    %106 = vmatpush.msra.mxu0 0.0
    %107 = vmatpush.msra.mxu0 0.0
    %108 = vmatpush.msra.mxu0 0.0
    %109 = vmatpush.msra.mxu0 0.0
    %110 = vmatpush.msra.mxu0 0.0
    %111 = vmatpush.msra.mxu0 0.0
    %112 = vmatpush.msra.mxu0 0.0
    %113 = vmatpush.msra.mxu0 %v95
    %114 = vmatpush.msra.mxu0 %v94
    %115 = vmatpush.msra.mxu0 %v93
    %116 = vmatpush.msra.mxu0 %v92
    %117 = vmatmul.f32.gmra.mxu0 %v99
    %v118 = vpop.f32.mrf.mxu0
    %v119 = vadd.f32 0.0, %v118
    %120 = vdwg.mxu0
    %121 = vadd.xlane.f32.xlu0 %v119
    %v122 = vpop.xlane.xlu0 %121
    %s123 = sld [smem:[#allocation3]]
    %v124 = vstv %s123
    %v125 = vadd.f32 %v122, %v124
    %vm126 = vcmask 7168
    %127 = vst.msk [vmem:[#allocation8] sm:$0xff] %vm126, %v125
    // Predicated region
    $region22: #{tpu_custom_call.1} parent=1 // pred_check
      _
    $region23: #{tpu_custom_call.1} parent=1 // pred_check_branch
      %129 = sbr.rel (0) target = $region25
    $region24: #{tpu_custom_call.1} parent=1 // pred_region
      // Predicated region
      $region26: #{tpu_custom_call.1} parent=24 // pred_check
        _
      $region27: #{tpu_custom_call.1} parent=24 // pred_check_branch
        %131 = sbr.rel (0) target = $region29
      $region28: #{tpu_custom_call.1} parent=24 // pred_region
        // Predicated region
        $region30: #{tpu_custom_call.1} parent=28 // pred_check
          _
        $region31: #{tpu_custom_call.1} parent=28 // pred_check_branch
          %133 = sbr.rel target = $region33
        $region32: #{tpu_custom_call.1} parent=28 // pred_region
          // Predicated region
          $region45: #{tpu_custom_call.1} parent=32 // pred_check
            _
          $region46: #{tpu_custom_call.1} parent=32 // pred_check_branch
            %149 = sbr.rel (0) target = $region48
          $region47: #{tpu_custom_call.1} parent=32 // pred_region
            %s151 = ssub.s32 4, 1
            loop: start=0, step=1, limit=1
            $region49: #{tpu_custom_call.1} parent=47 // loop_pre_header
              _
            $region50: #{tpu_custom_call.1} parent=47 // loop_header
              %s153 = sphi 0, %s157
              %p154 = scmp.ge.s32.totalorder %s153, 1
              %s158 = sphi [#allocation8], [#allocation8]
              %s159 = sphi %s3, %s3
            $region51: #{tpu_custom_call.1} parent=47 // loop_header_branch
              %156 = sbr.rel (%p154) target = $region55
            $region52: #{tpu_custom_call.1} parent=47 // loop_body
              %v160 = vld [vmem:[%s158] sm:%s151]
              %161 = vst [vmem:[%s159] sm:%s151] %v160
            $region53: #{tpu_custom_call.1} parent=47 // loop_footer
              %s157 = sadd.s32 1, %s153
            $region54: #{tpu_custom_call.1} parent=47 // loop_footer_branch
              %152 = sbr.rel target = $region50
            $region55: #{tpu_custom_call.1} parent=47 // loop_exit
              _
          $region48: #{tpu_custom_call.1} parent=32 // pred_fallthru
            _
        $region33: #{tpu_custom_call.1} parent=28 // pred_fallthru
          _
        // Predicated region
        $region34: #{tpu_custom_call.1} parent=28 // pred_check
          _
        $region35: #{tpu_custom_call.1} parent=28 // pred_check_branch
          %135 = sbr.rel (0) target = $region37
        $region36: #{tpu_custom_call.1} parent=28 // pred_region
          %s137 = ssub.s32 4, 1
          loop: start=0, step=1, limit=1
          $region38: #{tpu_custom_call.1} parent=36 // loop_pre_header
            _
          $region39: #{tpu_custom_call.1} parent=36 // loop_header
            %s139 = sphi 0, %s143
            %p140 = scmp.ge.s32.totalorder %s139, 1
            %s144 = sphi [#allocation8], [#allocation8]
            %s145 = sphi %s3, %s3
          $region40: #{tpu_custom_call.1} parent=36 // loop_header_branch
            %142 = sbr.rel (%p140) target = $region44
          $region41: #{tpu_custom_call.1} parent=36 // loop_body
            %v146 = vld [vmem:[%s144] sm:%s137]
            %147 = vst [vmem:[%s145] sm:%s137] %v146
          $region42: #{tpu_custom_call.1} parent=36 // loop_footer
            %s143 = sadd.s32 1, %s139
          $region43: #{tpu_custom_call.1} parent=36 // loop_footer_branch
            %138 = sbr.rel target = $region39
          $region44: #{tpu_custom_call.1} parent=36 // loop_exit
            _
        $region37: #{tpu_custom_call.1} parent=28 // pred_fallthru
          _
      $region29: #{tpu_custom_call.1} parent=24 // pred_fallthru
        _
      %162 = vnop
    $region25: #{tpu_custom_call.1} parent=1 // pred_fallthru
      _
    // Predicated region
    $region56: #{tpu_custom_call.1} parent=1 // pred_check
      _
    $region57: #{tpu_custom_call.1} parent=1 // pred_check_branch
      %164 = sbr.rel (0) target = $region59
    $region58: #{tpu_custom_call.1} parent=1 // pred_region
      _
    $region59: #{tpu_custom_call.1} parent=1 // pred_fallthru
      _
    %165 = vsyncpa [#allocation5], 1
    %166 = vsyncpa [#allocation7], 1

</llo_original>
